<compile_context>
chip_gen: v7x
topology: tpu7x:2x2x1
jax: 0.10.0
libtpu: 0.0.40
codegen_flags: <defaults>
</compile_context>

<pallas_src>
import functools

import jax
import jax.numpy as jnp
import numpy as np
from jax.experimental import pallas as pl
from jax.experimental.pallas import tpu as pltpu

ALPHA = 0.5
BETA = 0.5
EPS = 1e-7


def _tversky_partials_kernel(logits_ref, labels_ref, part_ref, *,
                             n_valid, mask_needed):
    # logits_ref: (C, TN) float; labels_ref: (1, TN) int; part_ref: (C, 3) f32
    x = logits_ref[...].astype(jnp.float32)          # accepts bf16 logits
    lab = labels_ref[...].astype(jnp.int32)          # accepts int8/int16 labels
    c, tn = x.shape

    if mask_needed:
        # Ragged last block: lanes >= n_valid hold stale/undefined VMEM.
        n = pl.program_id(1)
        lane = jax.lax.broadcasted_iota(jnp.int32, (1, tn), 1)
        valid = (n * tn + lane) < n_valid             # (1, TN) bool
        valid_f = valid.astype(jnp.float32)
        # Kill garbage at the source (select, not multiply -> NaN/Inf safe).
        x = jnp.where(valid, x, 0.0)

    # Numerically-stable per-pixel softmax over the class (sublane) axis.
    m = jnp.max(x, axis=0, keepdims=True)
    e = jnp.exp(x - m)
    denom = jnp.sum(e, axis=0, keepdims=True)
    inv = pl.reciprocal(denom, approx=True)           # EUP
    inv = inv * (2.0 - denom * inv)                   # one Newton step -> f32 exact
    if mask_needed:
        inv = inv * valid_f                           # fold lane mask into (1, TN) row
    pv = e * inv                                      # (C, TN); 0 on invalid lanes

    # One-hot via compare (no float one-hot materialization).
    cls = jax.lax.broadcasted_iota(jnp.int32, x.shape, 0)
    sel = cls == lab                                  # (C, TN) bool

    zero = jnp.zeros_like(pv)
    inter = jnp.sum(jnp.where(sel, pv, zero), axis=1, keepdims=True)   # (C, 1)
    sump = jnp.sum(pv, axis=1, keepdims=True)                           # (C, 1)
    if mask_needed:
        cnt_src = jnp.where(sel, valid_f, 0.0)        # garbage-label lanes -> 0
    else:
        cnt_src = sel.astype(jnp.float32)
    count = jnp.sum(cnt_src, axis=1, keepdims=True)                     # (C, 1)

    part_ref[:, 0:1] = inter
    part_ref[:, 1:2] = sump
    part_ref[:, 2:3] = count


def _pick_vmem_limit():
    """Generation-aware scoped-VMEM limit: ~3/4 of physical, capped at 96 MiB.
    v5e/v6e (128 MiB physical) -> 96 MiB; v7x (64 MiB physical) -> 48 MiB."""
    cap = None
    try:
        cap = int(getattr(pltpu.get_tpu_info(), "vmem_capacity_bytes", 0)) or None
    except Exception:
        cap = None
    if cap is None:
        cap = 64 * 1024 * 1024                        # conservative fallback (v7x-safe)
    return int(min(cap * 3 // 4, 96 * 1024 * 1024))


def tversky_loss(logits, true, *, tn=None):
    """logits: [B, C, H, W]; true: [B, 1, H, W] or [B, H, W] int class indices."""
    B, C, H, W = logits.shape
    # TODO(synk): num_classes == 1 sigmoid branch of the PyTorch module is not
    # implemented; this kernel covers the multi-class (softmax) branch.
    assert C > 1, "only the multi-class (C > 1) branch is implemented"
    N = H * W

    # Free contiguous reshapes (no HBM transpose, no padding pass).
    logits3 = logits.reshape(B, C, N)
    labels3 = true.reshape(B, 1, N)
    if labels3.dtype not in (jnp.int8, jnp.int16, jnp.int32):
        labels3 = labels3.astype(jnp.int32)           # e.g. int64 inputs

    vmem_limit = _pick_vmem_limit()
    logit_bytes = np.dtype(logits3.dtype).itemsize
    label_bytes = np.dtype(labels3.dtype).itemsize

    if tn is None:
        # Size the pixel tile from the VMEM budget: double-buffered input
        # blocks plus ~4 f32 (C, TN) temporaries, under half the scoped limit.
        budget = vmem_limit // 2
        per_pixel = 2 * (C * logit_bytes + label_bytes) + 4 * C * 4
        tn = max(128, (budget // per_pixel) // 128 * 128)
    else:
        # User-supplied tile: round to a lane multiple (correctness requirement).
        tn = max(128, (int(tn) // 128) * 128)
    if tn >= N:
        tn = N                                        # block == full dim is always legal
    nb = pl.cdiv(N, tn)
    mask_needed = (N % tn) != 0

    kernel = functools.partial(_tversky_partials_kernel,
                               n_valid=N, mask_needed=mask_needed)

    parts = pl.pallas_call(
        kernel,
        out_shape=jax.ShapeDtypeStruct((B, nb, C, 3), jnp.float32),
        grid_spec=pltpu.PrefetchScalarGridSpec(
            num_scalar_prefetch=0,
            grid=(B, nb),
            in_specs=[
                # batch squeezed; classes in sublanes, pixels in lanes.
                pl.BlockSpec((None, C, tn), lambda b, n: (b, 0, n)),
                pl.BlockSpec((None, 1, tn), lambda b, n: (b, 0, n)),
            ],
            # Each grid step owns its (C, 3) partial-sum slot -> no races, so
            # both axes may be 'parallel' (v7x runs on both TensorCores).
            out_specs=pl.BlockSpec((None, None, C, 3), lambda b, n: (b, n, 0, 0)),
        ),
        compiler_params=pltpu.CompilerParams(
            dimension_semantics=("parallel", "parallel"),
            vmem_limit_bytes=vmem_limit,
        ),
    )(logits3, labels3)

    # Tiny Tversky combine in plain JAX: (B, nb, C, 3) -> (C, 3) -> scalar.
    sums = jnp.sum(parts, axis=(0, 1))
    inter = sums[:, 0]
    fps = sums[:, 1] - inter                          # sum(p)  - intersection
    fns = sums[:, 2] - inter                          # count   - intersection
    tversky = inter / (inter + ALPHA * fps + BETA * fns + EPS)
    return 1.0 - jnp.mean(tversky)


def _tversky_loss_ref(logits, true):
    """Pure-JAX reference mirroring the PyTorch forward (multi-class branch,
    true of shape [B, 1, H, W] => dims = (0, 2, 3))."""
    C = logits.shape[1]
    t = true.reshape(true.shape[0], *true.shape[-2:])          # [B, H, W]
    true_1_hot = jax.nn.one_hot(t, C, dtype=jnp.float32)       # [B, H, W, C]
    true_1_hot = jnp.transpose(true_1_hot, (0, 3, 1, 2))       # [B, C, H, W]
    probas = jax.nn.softmax(logits.astype(jnp.float32), axis=1)
    dims = (0, 2, 3)
    intersection = jnp.sum(probas * true_1_hot, dims)
    fps = jnp.sum(probas * (1.0 - true_1_hot), dims)
    fns = jnp.sum((1.0 - probas) * true_1_hot, dims)
    tversky = intersection / (intersection + ALPHA * fps + BETA * fns + EPS)
    return 1.0 - jnp.mean(tversky)


if __name__ == "__main__":
    B, C, H, W = 2, 4, 16, 16
    key = jax.random.PRNGKey(0)
    k_logits, k_labels = jax.random.split(key)
    logits = jax.random.normal(k_logits, (B, C, H, W), dtype=jnp.float32)
    true = jax.random.randint(k_labels, (B, 1, H, W), 0, C, dtype=jnp.int32)

    loss = tversky_loss(logits, true)
    jax.block_until_ready(loss)
    loss_ref = _tversky_loss_ref(logits, true)
    np.testing.assert_allclose(np.asarray(loss), np.asarray(loss_ref),
                               rtol=1e-5, atol=1e-6)

    # Multi-block, tile-aligned path (N = 256, tn = 128).
    loss2 = tversky_loss(logits, true, tn=128)
    jax.block_until_ready(loss2)
    np.testing.assert_allclose(np.asarray(loss2), np.asarray(loss_ref),
                               rtol=1e-5, atol=1e-6)

    # Ragged last block + in-kernel lane masking (no HBM pad): N = 130, tn = 128.
    H2, W2 = 10, 13
    kr1, kr2 = jax.random.split(jax.random.PRNGKey(1))
    logits_r = jax.random.normal(kr1, (B, C, H2, W2), dtype=jnp.float32)
    true_r = jax.random.randint(kr2, (B, 1, H2, W2), 0, C, dtype=jnp.int32)
    loss3 = tversky_loss(logits_r, true_r, tn=128)
    jax.block_until_ready(loss3)
    loss3_ref = _tversky_loss_ref(logits_r, true_r)
    np.testing.assert_allclose(np.asarray(loss3), np.asarray(loss3_ref),
                               rtol=1e-5, atol=1e-6)

    print("KERNEL_OK")
</pallas_src>

<mosaic_0001>
module attributes {stable_mosaic.version = 11 : i64} {
  func.func @_tversky_partials_kernel(%arg0: i32, %arg1: i32, %arg2: memref<1x4x256xf32, #tpu.memory_space<vmem>>, %arg3: memref<1x1x256xi32, #tpu.memory_space<vmem>>, %arg4: memref<1x1x4x3xf32, #tpu.memory_space<vmem>>) attributes {dimension_semantics = [#tpu.dimension_semantics<parallel>, #tpu.dimension_semantics<parallel>], iteration_bounds = array<i64: 2, 1>, scalar_prefetch = 0 : i64, scratch_operands = 0 : i64, tpu.core_type = #tpu.core_type<tc>, window_params = [{transform_indices = @transform_0, window_bounds = array<i64: 1, 4, 256>}, {transform_indices = @transform_1, window_bounds = array<i64: 1, 1, 256>}, {transform_indices = @transform_2, window_bounds = array<i64: 1, 1, 4, 3>}]} {
    %c0 = arith.constant 0 : index
    %c0_0 = arith.constant 0 : index
    %c0_1 = arith.constant 0 : index
    %0 = vector.load %arg2[%c0, %c0_0, %c0_1] : memref<1x4x256xf32, #tpu.memory_space<vmem>>, vector<1x4x256xf32>
    %1 = vector.shape_cast %0 : vector<1x4x256xf32> to vector<4x256xf32>
    %c0_2 = arith.constant 0 : index
    %c0_3 = arith.constant 0 : index
    %c0_4 = arith.constant 0 : index
    %2 = vector.load %arg3[%c0_2, %c0_3, %c0_4] : memref<1x1x256xi32, #tpu.memory_space<vmem>>, vector<1x1x256xi32>
    %3 = vector.shape_cast %2 : vector<1x1x256xi32> to vector<1x256xi32>
    %cst = arith.constant dense<0xFF800000> : vector<256xf32>
    %4 = vector.multi_reduction <maximumf>, %1, %cst [0] : vector<4x256xf32> to vector<256xf32>
    %5 = vector.shape_cast %4 : vector<256xf32> to vector<1x256xf32>
    %6 = vector.broadcast %5 : vector<1x256xf32> to vector<4x256xf32>
    %7 = arith.subf %1, %6 : vector<4x256xf32>
    %8 = math.exp %7 : vector<4x256xf32>
    %cst_5 = arith.constant dense<0.000000e+00> : vector<256xf32>
    %9 = vector.multi_reduction <add>, %8, %cst_5 [0] : vector<4x256xf32> to vector<256xf32>
    %10 = vector.shape_cast %9 : vector<256xf32> to vector<1x256xf32>
    %11 = tpu.reciprocal %10 {approx = true} : vector<1x256xf32> -> vector<1x256xf32>
    %12 = arith.mulf %10, %11 : vector<1x256xf32>
    %cst_6 = arith.constant 2.000000e+00 : f32
    %13 = vector.broadcast %cst_6 : f32 to vector<1x256xf32>
    %14 = arith.subf %13, %12 : vector<1x256xf32>
    %15 = arith.mulf %11, %14 : vector<1x256xf32>
    %16 = vector.broadcast %15 : vector<1x256xf32> to vector<4x256xf32>
    %17 = arith.mulf %8, %16 : vector<4x256xf32>
    %18 = tpu.iota {dimensions = array<i32: 0>} : vector<4x256xi32>
    %19 = vector.broadcast %3 : vector<1x256xi32> to vector<4x256xi32>
    %20 = arith.cmpi eq, %18, %19 : vector<4x256xi32>
    %cst_7 = arith.constant 0.000000e+00 : f32
    %21 = vector.broadcast %cst_7 : f32 to vector<4x256xf32>
    %22 = arith.select %20, %17, %21 : vector<4x256xi1>, vector<4x256xf32>
    %cst_8 = arith.constant dense<0.000000e+00> : vector<4xf32>
    %23 = vector.multi_reduction <add>, %22, %cst_8 [1] : vector<4x256xf32> to vector<4xf32>
    %24 = vector.shape_cast %23 : vector<4xf32> to vector<4x1xf32>
    %cst_9 = arith.constant dense<0.000000e+00> : vector<4xf32>
    %25 = vector.multi_reduction <add>, %17, %cst_9 [1] : vector<4x256xf32> to vector<4xf32>
    %26 = vector.shape_cast %25 : vector<4xf32> to vector<4x1xf32>
    %27 = arith.extui %20 : vector<4x256xi1> to vector<4x256xi32>
    %28 = arith.sitofp %27 : vector<4x256xi32> to vector<4x256xf32>
    %cst_10 = arith.constant dense<0.000000e+00> : vector<4xf32>
    %29 = vector.multi_reduction <add>, %28, %cst_10 [1] : vector<4x256xf32> to vector<4xf32>
    %30 = vector.shape_cast %29 : vector<4xf32> to vector<4x1xf32>
    %c0_11 = arith.constant 0 : index
    %c0_12 = arith.constant 0 : index
    %c0_13 = arith.constant 0 : index
    %c0_14 = arith.constant 0 : index
    %31 = vector.load %arg4[%c0_11, %c0_12, %c0_13, %c0_14] : memref<1x1x4x3xf32, #tpu.memory_space<vmem>>, vector<1x1x4x1xf32>
    %32 = vector.shape_cast %31 : vector<1x1x4x1xf32> to vector<4x1xf32>
    %33 = vector.shape_cast %24 : vector<4x1xf32> to vector<1x1x4x1xf32>
    tpu.vector_store %arg4[%c0_11, %c0_12, %c0_13, %c0_14], %33 {strides = array<i32>} : memref<1x1x4x3xf32, #tpu.memory_space<vmem>>, vector<1x1x4x1xf32>,
    %c0_15 = arith.constant 0 : index
    %c0_16 = arith.constant 0 : index
    %c0_17 = arith.constant 0 : index
    %c1 = arith.constant 1 : index
    %34 = vector.load %arg4[%c0_15, %c0_16, %c0_17, %c1] : memref<1x1x4x3xf32, #tpu.memory_space<vmem>>, vector<1x1x4x1xf32>
    %35 = vector.shape_cast %34 : vector<1x1x4x1xf32> to vector<4x1xf32>
    %36 = vector.shape_cast %26 : vector<4x1xf32> to vector<1x1x4x1xf32>
    tpu.vector_store %arg4[%c0_15, %c0_16, %c0_17, %c1], %36 {strides = array<i32>} : memref<1x1x4x3xf32, #tpu.memory_space<vmem>>, vector<1x1x4x1xf32>,
    %c0_18 = arith.constant 0 : index
    %c0_19 = arith.constant 0 : index
    %c0_20 = arith.constant 0 : index
    %c2 = arith.constant 2 : index
    %37 = vector.load %arg4[%c0_18, %c0_19, %c0_20, %c2] : memref<1x1x4x3xf32, #tpu.memory_space<vmem>>, vector<1x1x4x1xf32>
    %38 = vector.shape_cast %37 : vector<1x1x4x1xf32> to vector<4x1xf32>
    %39 = vector.shape_cast %30 : vector<4x1xf32> to vector<1x1x4x1xf32>
    tpu.vector_store %arg4[%c0_18, %c0_19, %c0_20, %c2], %39 {strides = array<i32>} : memref<1x1x4x3xf32, #tpu.memory_space<vmem>>, vector<1x1x4x1xf32>,
    return
  }
  func.func @transform_0(%arg0: i32, %arg1: i32) -> (i32, i32, i32) {
    %c0_i32 = arith.constant 0 : i32
    %c0_i32_0 = arith.constant 0 : i32
    return %arg0, %c0_i32, %arg1 : i32, i32, i32
  }
  func.func @transform_1(%arg0: i32, %arg1: i32) -> (i32, i32, i32) {
    %c0_i32 = arith.constant 0 : i32
    %c0_i32_0 = arith.constant 0 : i32
    return %arg0, %c0_i32, %arg1 : i32, i32, i32
  }
  func.func @transform_2(%arg0: i32, %arg1: i32) -> (i32, i32, i32, i32) {
    %c0_i32 = arith.constant 0 : i32
    %c0_i32_0 = arith.constant 0 : i32
    %c0_i32_1 = arith.constant 0 : i32
    return %arg0, %arg1, %c0_i32, %c0_i32_0 : i32, i32, i32, i32
  }
}

</mosaic_0001>

<llo_original>
// kernel: tpu_custom_call.1
$region0: #{tpu_custom_call.1}
  #allocation0 [shape = 'u32[]', space=smem, size = 0x4, offset = 0x4, fixed_abs, tag = 'smem constant byte address 0x4 - core index']
  #allocation1 [shape = 'u32[144,128]{1,0:T(1,128)}', space=vmem, size = 0x12000, scoped, tag = 'internal scratch']
  %s0 = inlined_call_operand.hbm [shape: f32[2,4,256], index: 0, kind: input, shape index: {}]
  %s1 = inlined_call_operand.hbm [shape: s32[2,1,256], index: 1, kind: input, shape index: {}]
  %s2 = inlined_call_operand.vmem [shape: f32[2,1,4,3], index: 2, kind: output, shape index: {}]
  %s3 = sld [smem:[#allocation0]]
  $region49: #{tpu_custom_call.1} parent=0
    _
  %s5 = ssub.s32 1, %s3
  %s6 = scalar_select 0, %s5, %s3
  $region1: #{tpu_custom_call.1} parent=0
    #allocation2 [shape = 'u8[8192]{0}', space=vmem, size = 0x2000, scoped, tag = 'input window, operand 0']
    #allocation3 [shape = 's32[2]{0}', space=sflag, size = 0x8, scoped, tag = 'scoped memory for tpu_custom_call.1']
    #allocation4 [shape = 'u8[2048]{0}', space=vmem, size = 0x800, scoped, tag = 'input window, operand 1']
    #allocation5 [shape = 's32[2]{0}', space=sflag, size = 0x8, scoped, tag = 'scoped memory for tpu_custom_call.1']
    %7 = vsyncpa [#allocation3], 0
    %s8 = scalar_lea.sflag [#allocation3], 1
    %9 = vsyncpa %s8, 0
    %10 = vsyncpa [#allocation5], 0
    %s11 = scalar_lea.sflag [#allocation5], 1
    %12 = vsyncpa %s11, 0
    loop: start=0, step=1, limit=4
    $region2: #{tpu_custom_call.1} parent=1 // loop_pre_header
      _
    $region3: #{tpu_custom_call.1} parent=1 // loop_header
      %s14 = sphi 0, %s18
      %p15 = scmp.ge.s32.totalorder %s14, 4
      %s21 = sphi 0, %s33
      %s22 = sphi 0, %s29
      %s23 = sphi 0, %s21
      %s24 = sphi 0, %s22
      %s25 = sphi 0, %s23
      %s26 = sphi 0, %s24
      %s38 = sphi 0, %s40
      %s41 = sphi 0, %s38
      %s42 = sphi 0, %s41
      %s58 = sphi 0, %s42
      %s66 = sphi 0, %s68
      %s69 = sphi 0, %s66
      %s70 = sphi 0, %s69
      %s86 = sphi 0, %s70
      %s94 = sphi 0, %s96
      %s97 = sphi 0, %s94
      %s98 = sphi 0, %s97
      %s114 = sphi 0, %s98
    $region4: #{tpu_custom_call.1} parent=1 // loop_header_branch
      %17 = sbr.rel (%p15) target = $region8
    $region5: #{tpu_custom_call.1} parent=1 // loop_body
      %s19 = ssub.s32 %s14, 1
      %s20 = ssub.s32 %s14, 2
      %s27 = sadd.s32 1, %s22
      %p28 = scmp.ge.s32.totalorder %s27, 1
      %s29 = scalar_select %p28, 0, %s27
      %s30 = sadd.s32 1, %s21
      %s31 = scalar_select %p28, %s30, %s21
      %p32 = scmp.ge.s32.totalorder %s31, 2
      %s33 = scalar_select %p32, 0, %s31
      %s34 = ssub.s32 %s21, %s33
      %s35 = ssub.s32 %s22, %s29
      %s36 = sor.u32 %s34, %s35
      %p37 = scmp.eq.s32.totalorder %s36, 0
      %s39 = sadd.s32 %s38, 1
      %s40 = scalar_select %p37, %s38, %s39
      %p43 = pneg %p37
      %p44 = scmp.eq.s32.totalorder %s14, 1
      %p45 = por %p43, %p44
      %p46 = scmp.ne.s32.totalorder %s38, %s41
      %p47 = scmp.eq.s32.totalorder %s14, 0
      %p48 = por %p46, %p47
      %p49 = scmp.ne.s32.totalorder %s38, %s41
      %p50 = scmp.eq.s32.totalorder %s19, 1
      %p51 = por %p49, %p50
      %p52 = scmp.ne.s32.totalorder %s41, %s42
      %p53 = scmp.eq.s32.totalorder %s19, 0
      %p54 = por %p52, %p53
      %p55 = scmp.ne.s32.totalorder %s41, %s42
      %p56 = scmp.eq.s32.totalorder %s20, 1
      %p57 = por %p55, %p56
      %p59 = scmp.ne.s32.totalorder %s42, %s58
      %p60 = scmp.eq.s32.totalorder %s20, 0
      %p61 = por %p59, %p60
      %s62 = ssub.s32 %s21, %s33
      %s63 = ssub.s32 %s22, %s29
      %s64 = sor.u32 %s62, %s63
      %p65 = scmp.eq.s32.totalorder %s64, 0
      %s67 = sadd.s32 %s66, 1
      %s68 = scalar_select %p65, %s66, %s67
      %p71 = pneg %p65
      %p72 = scmp.eq.s32.totalorder %s14, 1
      %p73 = por %p71, %p72
      %p74 = scmp.ne.s32.totalorder %s66, %s69
      %p75 = scmp.eq.s32.totalorder %s14, 0
      %p76 = por %p74, %p75
      %p77 = scmp.ne.s32.totalorder %s66, %s69
      %p78 = scmp.eq.s32.totalorder %s19, 1
      %p79 = por %p77, %p78
      %p80 = scmp.ne.s32.totalorder %s69, %s70
      %p81 = scmp.eq.s32.totalorder %s19, 0
      %p82 = por %p80, %p81
      %p83 = scmp.ne.s32.totalorder %s69, %s70
      %p84 = scmp.eq.s32.totalorder %s20, 1
      %p85 = por %p83, %p84
      %p87 = scmp.ne.s32.totalorder %s70, %s86
      %p88 = scmp.eq.s32.totalorder %s20, 0
      %p89 = por %p87, %p88
      %s90 = ssub.s32 %s21, %s33
      %s91 = ssub.s32 %s22, %s29
      %s92 = sor.u32 %s90, %s91
      %p93 = scmp.eq.s32.totalorder %s92, 0
      %s95 = sadd.s32 %s94, 1
      %s96 = scalar_select %p93, %s94, %s95
      %p99 = pneg %p93
      %p100 = scmp.eq.s32.totalorder %s14, 1
      %p101 = por %p99, %p100
      %p102 = scmp.ne.s32.totalorder %s94, %s97
      %p103 = scmp.eq.s32.totalorder %s14, 0
      %p104 = por %p102, %p103
      %p105 = scmp.ne.s32.totalorder %s94, %s97
      %p106 = scmp.eq.s32.totalorder %s19, 1
      %p107 = por %p105, %p106
      %p108 = scmp.ne.s32.totalorder %s97, %s98
      %p109 = scmp.eq.s32.totalorder %s19, 0
      %p110 = por %p108, %p109
      %p111 = scmp.ne.s32.totalorder %s97, %s98
      %p112 = scmp.eq.s32.totalorder %s20, 1
      %p113 = por %p111, %p112
      %p115 = scmp.ne.s32.totalorder %s98, %s114
      %p116 = scmp.eq.s32.totalorder %s20, 0
      %p117 = por %p115, %p116
      %p118 = scmp.le.s32.totalorder 1, %s14
      %p119 = scmp.lt.s32.totalorder %s14, 3
      %p120 = pnand %p118, %p119
      %p121 = pneg %p120
      // Predicated region
      $region9: #{tpu_custom_call.1} parent=5 // pred_check
        _
      $region10: #{tpu_custom_call.1} parent=5 // pred_check_branch
        %123 = sbr.rel (%p120) target = $region12
      $region11: #{tpu_custom_call.1} parent=5 // pred_region
        %s124 = ssub.s32 %s14, 1
      $region12: #{tpu_custom_call.1} parent=5 // pred_fallthru
        _
      %p125 = scmp.lt.s32.totalorder %s14, 2
      // Predicated region
      $region13: #{tpu_custom_call.1} parent=5 // pred_check
        %p126 = pneg %p125
      $region14: #{tpu_custom_call.1} parent=5 // pred_check_branch
        %128 = sbr.rel (%p126) target = $region16
      $region15: #{tpu_custom_call.1} parent=5 // pred_region
        // Predicated region
        $region17: #{tpu_custom_call.1} parent=15 // pred_check
          %p129 = pneg %p48
        $region18: #{tpu_custom_call.1} parent=15 // pred_check_branch
          %131 = sbr.rel (%p129) target = $region20
        $region19: #{tpu_custom_call.1} parent=15 // pred_region
          %s132 = sand.u32 %s38, 1
          %s133 = scalar_lea.sflag [#allocation3], %s132
          %s134 = sand.u32 %s38, 1
          %s135 = smul.addr %s134, 8
          %s136 = scalar_lea.vmem [#allocation2], %s135
          %s137 = smul.u32 2, %s22
          %s139 = ssub.s32 128, 128
          %140 = vsyncadd %s133, %s139
          %s141 = smul.addr %s21, 2
          %s142 = sadd.s32 %s137, %s141
          %s143 = smul.addr %s142, 64
          %s144 = scalar_lea.hbm %s0, %s143
          %s146 = sshll.u32 %s136, 4
          %s147 = int_to_ptr.vmem [resolvable:$true] %s146
          %149 = dma.hbm_to_vmem [thread:$0]  %s144, 128, %s147, %s133
        $region20: #{tpu_custom_call.1} parent=15 // pred_fallthru
          _
        // Predicated region
        $region21: #{tpu_custom_call.1} parent=15 // pred_check
          %p150 = pneg %p76
        $region22: #{tpu_custom_call.1} parent=15 // pred_check_branch
          %152 = sbr.rel (%p150) target = $region24
        $region23: #{tpu_custom_call.1} parent=15 // pred_region
          %s153 = sand.u32 %s66, 1
          %s154 = scalar_lea.sflag [#allocation5], %s153
          %s155 = sand.u32 %s66, 1
          %s156 = smul.addr %s155, 2
          %s157 = scalar_lea.vmem [#allocation4], %s156
          %s158 = smul.u32 2, %s22
          %s160 = ssub.s32 32, 32
          %161 = vsyncadd %s154, %s160
          %s162 = smul.addr %s21, 2
          %s163 = sadd.s32 %s158, %s162
          %s164 = smul.addr %s163, 16
          %s165 = scalar_lea.hbm %s1, %s164
          %s167 = sshll.u32 %s157, 4
          %s168 = int_to_ptr.vmem [resolvable:$true] %s167
          %170 = dma.hbm_to_vmem [thread:$0]  %s165, 32, %s168, %s154
        $region24: #{tpu_custom_call.1} parent=15 // pred_fallthru
          _
      $region16: #{tpu_custom_call.1} parent=5 // pred_fallthru
        _
      %p171 = scmp.le.s32.totalorder 1, %s14
      %p172 = scmp.lt.s32.totalorder %s14, 3
      %p173 = pnand %p171, %p172
      %p174 = pneg %p173
      // Predicated region
      $region25: #{tpu_custom_call.1} parent=5 // pred_check
        _
      $region26: #{tpu_custom_call.1} parent=5 // pred_check_branch
        %176 = sbr.rel (%p173) target = $region28
      $region27: #{tpu_custom_call.1} parent=5 // pred_region
        %s177 = ssub.s32 %s14, 1
        %s178 = sand.u32 %s41, 1
        %s179 = scalar_lea.sflag [#allocation3], %s178
        %s180 = sand.u32 %s41, 1
        %s181 = smul.addr %s180, 8
        %s182 = scalar_lea.vmem [#allocation2], %s181
        // Predicated region
        $region29: #{tpu_custom_call.1} parent=27 // pred_check
          %p183 = pneg %p54
        $region30: #{tpu_custom_call.1} parent=27 // pred_check_branch
          %185 = sbr.rel (%p183) target = $region32
        $region31: #{tpu_custom_call.1} parent=27 // pred_region
          %186 = dma.done %s179, 128
        $region32: #{tpu_custom_call.1} parent=27 // pred_fallthru
          _
        %s187 = sand.u32 %s69, 1
        %s188 = scalar_lea.sflag [#allocation5], %s187
        %s189 = sand.u32 %s69, 1
        %s190 = smul.addr %s189, 2
        %s191 = scalar_lea.vmem [#allocation4], %s190
        // Predicated region
        $region33: #{tpu_custom_call.1} parent=27 // pred_check
          %p192 = pneg %p82
        $region34: #{tpu_custom_call.1} parent=27 // pred_check_branch
          %194 = sbr.rel (%p192) target = $region36
        $region35: #{tpu_custom_call.1} parent=27 // pred_region
          %195 = dma.done %s188, 32
        $region36: #{tpu_custom_call.1} parent=27 // pred_fallthru
          _
        %s196 = sand.u32 %s41, 1
        %s197 = scalar_lea.sflag [#allocation3], %s196
        %s198 = sand.u32 %s41, 1
        %s199 = smul.addr %s198, 8
        %s200 = scalar_lea.vmem [#allocation2], %s199
        %p201 = pneg %p54
        %p202 = pneg %p51
        %s203 = sand.u32 %s69, 1
        %s204 = scalar_lea.sflag [#allocation5], %s203
        %s205 = sand.u32 %s69, 1
        %s206 = smul.addr %s205, 2
        %s207 = scalar_lea.vmem [#allocation4], %s206
        %p208 = pneg %p82
        %p209 = pneg %p79
        %p210 = pneg %p110
        %p211 = pneg %p107
        %p212 = scmp.lt.s32.totalorder %s23, 1
        %s213 = scalar_select %p212, %s23, 1
        %p214 = scmp.lt.s32.totalorder %s24, 0
        %s215 = scalar_select %p214, %s24, 0
        %s216 = sadd.s32 %s215, %s213
        %s217 = smul.addr %s216, 4
        %s218 = scalar_lea.vmem %s2, %s217
        %s219 = smul.u32 2, %s24
        %s220 = smul.u32 2, %s24
        %p221 = scmp.lt.s32.totalorder %s23, 1
        %s222 = scalar_select %p221, %s23, 1
        %p223 = scmp.lt.s32.totalorder %s24, 0
        %s224 = scalar_select %p223, %s24, 0
        %s225 = sadd.s32 %s224, %s222
        %s226 = smul.addr %s225, 4
        %s227 = scalar_lea.vmem %s2, %s226
        %v228 = vld [vmem:[%s182] sm:$0xff]
        %v229 = vld [vmem:[%s191] sm:$0x3]
        %v231 = vcombine.high %v228, %v228
        %vm233 = vcmask 1043456
        %v234 = vsel %vm233, %v228, -inf
        %v235 = vrot.slane %v234, 4
        %v236 = vmax.f32 %v234, %v235
        %v237 = vrot.slane %v236, 2
        %v238 = vmax.f32 %v236, %v237
        %v239 = vrot.slane %v238, 1
        %v240 = vmax.f32 %v238, %v239
        %v241 = vsel %vm233, %v231, -inf
        %v242 = vrot.slane %v241, 4
        %v243 = vmax.f32 %v241, %v242
        %v244 = vrot.slane %v243, 2
        %v245 = vmax.f32 %v243, %v244
        %v246 = vrot.slane %v245, 1
        %v247 = vmax.f32 %v245, %v246
        %v250 = vcombine.low %v240, %v247
        %v252 = vsub.f32 %v228, %v250
        %v253 = vmul.f32 %v252, 1.442695
        %v254 = vpow.pop %v253
        %v256 = vcombine.high %v254, %v254
        %v258 = vsel %vm233, %v254, 0.0
        %v259 = vrot.slane %v258, 4
        %v260 = vadd.f32 %v258, %v259
        %v261 = vrot.slane %v260, 2
        %v262 = vadd.f32 %v260, %v261
        %v263 = vrot.slane %v262, 1
        %v264 = vadd.f32 %v262, %v263
        %v265 = vsel %vm233, %v256, 0.0
        %v266 = vrot.slane %v265, 4
        %v267 = vadd.f32 %v265, %v266
        %v268 = vrot.slane %v267, 2
        %v269 = vadd.f32 %v267, %v268
        %v270 = vrot.slane %v269, 1
        %v271 = vadd.f32 %v269, %v270
        %v272 = vrcp.pop %v264
        %v273 = vrcp.pop %v271
        %v274 = vmul.f32 %v264, %v272
        %v275 = vmul.f32 %v271, %v273
        %v276 = vsub.f32 2.0, %v274
        %v277 = vsub.f32 2.0, %v275
        %v278 = vmul.f32 %v272, %v276
        %v279 = vmul.f32 %v273, %v277
        %v282 = vcombine.low %v278, %v279
        %v284 = vmul.f32 %v254, %v282
        %v285 = vlaneseq
        %v286 = vshrl.u32 %v285, 7
        %v287 = vlaneseq
        %v288 = vshrl.u32 %v287, 7
        %v289 = vsub.s32 0, %v288
        %v290 = vrot.slane %v229, %v289
        %v291 = vlaneseq
        %v292 = vshrl.u32 %v291, 7
        %v293 = vsub.s32 1, %v292
        %v294 = vrot.slane %v229, %v293
        %vm295 = vcmp.eq.s32.totalorder %v286, %v290
        %vm296 = vcmp.eq.s32.totalorder %v286, %v294
        %v298 = vcombine.high %v284, %v284
        %v300 = vsel %vm295, %v284, 0.0
        %v301 = vsel %vm296, %v298, 0.0
        %v302 = vsel %vm233, %v300, 0.0
        %v303 = vsel %vm233, %v301, 0.0
        %v304 = vadd.f32 %v302, %v303
        %305 = vadd.xlane.f32.xlu0 %v304
        %v306 = vpop.xlane.xlu0 %305
        %v307 = vsel %vm233, %v284, 0.0
        %v308 = vsel %vm233, %v298, 0.0
        %v309 = vadd.f32 %v307, %v308
        %310 = vadd.xlane.f32.xlu0 %v309
        %v311 = vpop.xlane.xlu0 %310
        %v312 = vsel %vm295, 1, 0
        %v313 = vsel %vm296, 1, 0
        %v314 = vcvt.s32.f32 %v312
        %v315 = vcvt.s32.f32 %v313
        %v316 = vsel %vm233, %v314, 0.0
        %v317 = vsel %vm233, %v315, 0.0
        %v318 = vadd.f32 %v316, %v317
        %319 = vadd.xlane.f32.xlu0 %v318
        %v320 = vpop.xlane.xlu0 %319
        %vm321 = vcmask 3072
        %322 = vst.msk [vmem:[%s227] sm:$0xf] %vm321, %v306
        %vm323 = vcmask 11272
        %324 = vst.msk [vmem:[%s227] sm:$0xf] %vm323, %v311
        %vm325 = vcmask 19472
        %326 = vst.msk [vmem:[%s227] sm:$0xf] %vm325, %v320
        %p327 = scmp.lt.s32.totalorder %s23, 1
        %s328 = scalar_select %p327, %s23, 1
        %p329 = scmp.lt.s32.totalorder %s24, 0
        %s330 = scalar_select %p329, %s24, 0
        %s331 = sadd.s32 %s330, %s328
        %s332 = smul.addr %s331, 4
        %s333 = scalar_lea.vmem %s2, %s332
        // Predicated region
        $region37: #{tpu_custom_call.1} parent=27 // pred_check
          %p334 = pneg %p107
        $region38: #{tpu_custom_call.1} parent=27 // pred_check_branch
          %336 = sbr.rel (%p334) target = $region40
        $region39: #{tpu_custom_call.1} parent=27 // pred_region
          _
        $region40: #{tpu_custom_call.1} parent=27 // pred_fallthru
          _
      $region28: #{tpu_custom_call.1} parent=5 // pred_fallthru
        _
      %p337 = scmp.le.s32.totalorder 2, %s14
      // Predicated region
      $region41: #{tpu_custom_call.1} parent=5 // pred_check
        %p338 = pneg %p337
      $region42: #{tpu_custom_call.1} parent=5 // pred_check_branch
        %340 = sbr.rel (%p338) target = $region44
      $region43: #{tpu_custom_call.1} parent=5 // pred_region
        %s341 = ssub.s32 %s14, 2
        // Predicated region
        $region45: #{tpu_custom_call.1} parent=43 // pred_check
          %p342 = pneg %p113
        $region46: #{tpu_custom_call.1} parent=43 // pred_check_branch
          %344 = sbr.rel (%p342) target = $region48
        $region47: #{tpu_custom_call.1} parent=43 // pred_region
          %p345 = scmp.lt.s32.totalorder %s25, 1
          %s346 = scalar_select %p345, %s25, 1
          %p347 = scmp.lt.s32.totalorder %s26, 0
          %s348 = scalar_select %p347, %s26, 0
          %s349 = sadd.s32 %s348, %s346
          %s350 = smul.addr %s349, 4
          %s351 = scalar_lea.vmem %s2, %s350
        $region48: #{tpu_custom_call.1} parent=43 // pred_fallthru
          _
      $region44: #{tpu_custom_call.1} parent=5 // pred_fallthru
        _
    $region6: #{tpu_custom_call.1} parent=1 // loop_footer
      %s18 = sadd.s32 1, %s14
    $region7: #{tpu_custom_call.1} parent=1 // loop_footer_branch
      %13 = sbr.rel target = $region3
    $region8: #{tpu_custom_call.1} parent=1 // loop_exit
      _
    %352 = vsyncpa [#allocation3], 1
    %s353 = scalar_lea.sflag [#allocation3], 1
    %354 = vsyncpa %s353, 1
    %355 = vsyncpa [#allocation5], 1
    %s356 = scalar_lea.sflag [#allocation5], 1
    %357 = vsyncpa %s356, 1

</llo_original>
